<compile_context>
chip_gen: v7x
topology: tpu7x:2x2x1
jax: 0.10.0
libtpu: 0.0.40
codegen_flags: <defaults>
</compile_context>

<pallas_src>
import functools

import jax
import jax.numpy as jnp
from jax.experimental import pallas as pl
from jax.experimental.pallas import tpu as pltpu


def _pick_spatial_tile(hw, n, max_tile_hw):
    """Choose the spatial (lane) tile for the flattened H*W axis.

    Never pads the array and never degrades to 128-lane tiles; ragged tails are
    handled by Pallas's masked edge blocks.
    """
    max_tile = max(128, (max_tile_hw // 128) * 128)
    if hw <= max_tile:
        tile = hw
        # v7x has two TensorCores: when the batch alone cannot provide >= 2
        # parallel grid steps, split the spatial axis — but only when each half
        # stays >= 1024 lanes (below that, DMA efficiency falls off a cliff).
        if n == 1 and hw % 256 == 0 and hw >= 2048:
            tile = hw // 2
        return tile
    # Larger than the cap: 128-aligned tiles; last block may be ragged (masked).
    return max_tile


def _conv1x1_kernel(x_ref, w_ref, o_ref, *, cast_to_bf16):
    # x_ref: (1, Cin, tile_hw)  float32 input tile (lane dim = spatial H*W)
    # w_ref: (Cout, Cin)        float32 weight (constant index map -> resident)
    # o_ref: (1, Cout, tile_hw) bf16 (or f32) output tile
    x = x_ref[0]
    w = w_ref[...]
    if cast_to_bf16:
        # In-kernel cast (VPU is free here) — avoids a separate HBM convert pass.
        x = x.astype(jnp.bfloat16)
        w = w.astype(jnp.bfloat16)
    o_ref[0] = jnp.dot(w, x, preferred_element_type=jnp.float32).astype(o_ref.dtype)


def conv1x1_nchw_pallas(x_r, w, *, use_bf16=True, max_tile_hw=8192):
    """1x1 conv as a per-batch matmul in NCHW orientation.

    x_r: (N, Cin, HW)  float32 (no pre-cast; cast happens in-kernel)
    w  : (Cout, Cin)   float32
    returns (N, Cout, HW) in bfloat16 (use_bf16=True) or float32.
    """
    N, Cin, HW = x_r.shape
    Cout, Cin2 = w.shape
    assert Cin == Cin2

    tile_hw = _pick_spatial_tile(HW, N, max_tile_hw)
    grid = (N, pl.cdiv(HW, tile_hw))

    out_dtype = jnp.bfloat16 if use_bf16 else jnp.float32
    out_itemsize = jnp.dtype(out_dtype).itemsize

    cost = pl.CostEstimate(
        flops=2 * N * HW * Cin * Cout,
        transcendentals=0,
        bytes_accessed=(
            N * Cin * HW * x_r.dtype.itemsize      # x read (f32)
            + Cout * Cin * w.dtype.itemsize        # weight read (once)
            + N * Cout * HW * out_itemsize         # output write
        ),
    )

    kernel = functools.partial(_conv1x1_kernel, cast_to_bf16=use_bf16)

    return pl.pallas_call(
        kernel,
        out_shape=jax.ShapeDtypeStruct((N, Cout, HW), out_dtype),
        grid_spec=pl.GridSpec(
            grid=grid,
            in_specs=[
                pl.BlockSpec((1, Cin, tile_hw), lambda n, t: (n, 0, t)),   # x tile
                pl.BlockSpec((Cout, Cin), lambda n, t: (0, 0)),            # weight
            ],
            out_specs=pl.BlockSpec((1, Cout, tile_hw), lambda n, t: (n, 0, t)),
        ),
        compiler_params=pltpu.CompilerParams(
            dimension_semantics=("parallel", "parallel"),
        ),
        cost_estimate=cost,
    )(x_r, w)


class SSRupsamplingPallas:
    """JAX/Pallas port of the PyTorch SSRupsampling module."""

    def __init__(self, inplanes, scale, num_class=21, pad=0, key=None,
                 use_bf16=True, out_dtype=jnp.float32):
        assert pad == 0, "only pad=0 (default) is supported, matching 1x1 conv use"
        self.inplanes = inplanes
        self.scale = scale
        self.num_class = num_class
        self.use_bf16 = use_bf16
        self.out_dtype = out_dtype
        c_out = num_class * scale * scale
        if key is None:
            key = jax.random.PRNGKey(0)
        k_w, k_p = jax.random.split(key)
        # Deterministic synthetic parameters (shapes match nn.Conv2d weights).
        # conv_w: (Cout, Cin, 1, 1); conv_p: (Cin, Cout, 1, 1) — conv_p unused
        # in forward (matching the PyTorch module).
        self.conv_w_weight = (
            jax.random.normal(k_w, (c_out, inplanes, 1, 1), jnp.float32) * 0.05
        )
        self.conv_p_weight = (
            jax.random.normal(k_p, (inplanes, c_out, 1, 1), jnp.float32) * 0.05
        )

    def __call__(self, x):
        # x: (N, Cin, H, W) NCHW float32, matching PyTorch.
        N, Cin, H, W = x.shape
        s = self.scale
        nc = self.num_class

        x_r = x.reshape(N, Cin, H * W)             # free view, no transpose, no cast
        w = self.conv_w_weight[:, :, 0, 0]         # (Cout, Cin) f32

        # ---- hot path: 1x1 conv as per-batch matmul (bf16 out, f32 accum) ----
        y = conv1x1_nchw_pallas(x_r, w, use_bf16=self.use_bf16)   # (N, Cout, HW)

        # ---- pixel-shuffle chain collapsed to ONE transpose (in bf16) ----
        # The original permute/view chain maps
        #   out[n, k, h*s+i, w*s+j] = y[n, (i*s + j)*num_class + k, h, w]
        # so factor the channel axis as (s, s, num_class) and transpose once.
        # The upcast to out_dtype fuses into the transpose (single f32 write).
        y6 = y.reshape(N, s, s, nc, H, W)
        out = jnp.transpose(y6, (0, 3, 4, 1, 5, 2)).reshape(N, nc, H * s, W * s)
        return out.astype(self.out_dtype)


def _reference_forward(x, conv_w_weight, scale, num_class):
    """Pure-JAX f32 reference replicating the exact PyTorch permute/view chain."""
    N, Cin, H, W = x.shape
    s = scale
    C = num_class * s * s
    w = conv_w_weight[:, :, 0, 0]                        # (Cout, Cin)
    y = jnp.einsum("nchw,oc->nohw", x, w)                # (N, Cout, H, W)
    y_p = jnp.transpose(y, (0, 3, 2, 1))                 # (N, W, H, C)
    y_p = y_p.reshape(N, W, H * s, C // s)               # (N, W, H*s, C/s)
    y_p = jnp.transpose(y_p, (0, 2, 1, 3))               # (N, H*s, W, C/s)
    y_p = y_p.reshape(N, H * s, W * s, C // (s * s))     # (N, H*s, W*s, num_class)
    return jnp.transpose(y_p, (0, 3, 1, 2))              # (N, num_class, H*s, W*s)


if __name__ == "__main__":
    key = jax.random.PRNGKey(0)
    k_x, k_params = jax.random.split(key)

    # Small shapes consistent with the module.
    N, inplanes, H, W = 2, 32, 16, 16
    scale, num_class = 2, 21

    x = jax.random.normal(k_x, (N, inplanes, H, W), jnp.float32)

    module = SSRupsamplingPallas(inplanes, scale, num_class=num_class,
                                 key=k_params, use_bf16=True)
    fwd = jax.jit(module.__call__)
    out = fwd(x)
    out = jax.block_until_ready(out)

    expected_shape = (N, num_class, H * scale, W * scale)
    assert out.shape == expected_shape, (out.shape, expected_shape)

    ref = _reference_forward(x, module.conv_w_weight, scale, num_class)
    # bf16 matmul inputs + bf16 kernel output (f32 accumulation): loosened tol.
    assert jnp.allclose(out, ref, atol=2e-2, rtol=2e-2), (
        "mismatch vs reference, max abs diff = "
        + str(float(jnp.max(jnp.abs(out - ref))))
    )

    print("KERNEL_OK")
</pallas_src>

<mosaic_0001>
module attributes {stable_mosaic.version = 11 : i64} {
  func.func @_conv1x1_kernel(%arg0: i32, %arg1: i32, %arg2: memref<1x32x256xf32, #tpu.memory_space<vmem>>, %arg3: memref<84x32xf32, #tpu.memory_space<vmem>>, %arg4: memref<1x84x256xbf16, #tpu.memory_space<vmem>>) attributes {dimension_semantics = [#tpu.dimension_semantics<parallel>, #tpu.dimension_semantics<parallel>], iteration_bounds = array<i64: 2, 1>, scalar_prefetch = 0 : i64, scratch_operands = 0 : i64, tpu.core_type = #tpu.core_type<tc>, window_params = [{transform_indices = @transform_0, window_bounds = array<i64: 1, 32, 256>}, {pipeline_mode = #tpu.pipeline_mode<synchronous>, transform_indices = @transform_1, window_bounds = array<i64: 84, 32>}, {transform_indices = @transform_2, window_bounds = array<i64: 1, 84, 256>}]} {
    %c0 = arith.constant 0 : index
    %c0_0 = arith.constant 0 : index
    %c0_1 = arith.constant 0 : index
    %0 = vector.load %arg2[%c0, %c0_0, %c0_1] : memref<1x32x256xf32, #tpu.memory_space<vmem>>, vector<1x32x256xf32>
    %1 = vector.shape_cast %0 : vector<1x32x256xf32> to vector<32x256xf32>
    %c0_2 = arith.constant 0 : index
    %c0_3 = arith.constant 0 : index
    %2 = vector.load %arg3[%c0_2, %c0_3] : memref<84x32xf32, #tpu.memory_space<vmem>>, vector<84x32xf32>
    %3 = arith.truncf %1 : vector<32x256xf32> to vector<32x256xbf16>
    %4 = arith.truncf %2 : vector<84x32xf32> to vector<84x32xbf16>
    %cst = arith.constant dense<0.000000e+00> : vector<84x256xf32>
    %5 = tpu.matmul %4, %3, %cst {dimension_numbers = #tpu.dot_dimension_numbers<[1], [0], [0], [1], [0, 0, 1, 1], [], []>} : vector<84x32xbf16>, vector<32x256xbf16>, vector<84x256xf32> -> vector<84x256xf32>
    %6 = arith.truncf %5 : vector<84x256xf32> to vector<84x256xbf16>
    %c0_4 = arith.constant 0 : index
    %c0_5 = arith.constant 0 : index
    %c0_6 = arith.constant 0 : index
    %7 = vector.load %arg4[%c0_4, %c0_5, %c0_6] : memref<1x84x256xbf16, #tpu.memory_space<vmem>>, vector<1x84x256xbf16>
    %8 = vector.shape_cast %7 : vector<1x84x256xbf16> to vector<84x256xbf16>
    %9 = vector.shape_cast %6 : vector<84x256xbf16> to vector<1x84x256xbf16>
    tpu.vector_store %arg4[%c0_4, %c0_5, %c0_6], %9 {strides = array<i32>} : memref<1x84x256xbf16, #tpu.memory_space<vmem>>, vector<1x84x256xbf16>,
    return
  }
  func.func @transform_0(%arg0: i32, %arg1: i32) -> (i32, i32, i32) {
    %c0_i32 = arith.constant 0 : i32
    %c0_i32_0 = arith.constant 0 : i32
    return %arg0, %c0_i32, %arg1 : i32, i32, i32
  }
  func.func @transform_1(%arg0: i32, %arg1: i32) -> (i32, i32) {
    %c0_i32 = arith.constant 0 : i32
    %c0_i32_0 = arith.constant 0 : i32
    %c0_i32_1 = arith.constant 0 : i32
    return %c0_i32, %c0_i32_0 : i32, i32
  }
  func.func @transform_2(%arg0: i32, %arg1: i32) -> (i32, i32, i32) {
    %c0_i32 = arith.constant 0 : i32
    %c0_i32_0 = arith.constant 0 : i32
    return %arg0, %c0_i32, %arg1 : i32, i32, i32
  }
}

</mosaic_0001>

<llo_original>
// kernel: a_call__.1
$region0: #{a_call__.1}
  #allocation0 [shape = 'u32[]', space=smem, size = 0x4, offset = 0x4, fixed_abs, tag = 'smem constant byte address 0x4 - core index']
  #allocation1 [shape = 'u32[144,128]{1,0:T(1,128)}', space=vmem, size = 0x12000, scoped, tag = 'internal scratch']
  %s0 = inlined_call_operand.vmem [shape: f32[2,32,256], index: 0, kind: input, shape index: {}]
  %s1 = inlined_call_operand.vmem [shape: f32[84,32], index: 1, kind: input, shape index: {}]
  %s2 = inlined_call_operand.vmem [shape: bf16[2,84,256], index: 2, kind: output, shape index: {}]
  %s3 = sld [smem:[#allocation0]]
  $region41: #{a_call__.1} parent=0
    _
  %s5 = ssub.s32 1, %s3
  %s6 = scalar_select 0, %s5, %s3
  loop: start=0, step=1, limit=4
  $region2: #{a_call__.1} parent=0 // loop_pre_header
    _
  $region3: #{a_call__.1} parent=0 // loop_header
    %s8 = sphi 0, %s12
    %p9 = scmp.ge.s32.totalorder %s8, 4
    %s15 = sphi 0, %s27
    %s16 = sphi 0, %s23
    %s17 = sphi 0, %s15
    %s18 = sphi 0, %s16
    %s19 = sphi 0, %s17
    %s20 = sphi 0, %s18
    %s32 = sphi 0, %s34
    %s35 = sphi 0, %s32
    %s36 = sphi 0, %s35
    %s52 = sphi 0, %s36
    %s56 = sphi 0, %s56
    %s58 = sphi 0, %s56
    %s59 = sphi 0, %s58
    %s73 = sphi 0, %s59
    %s81 = sphi 0, %s83
    %s84 = sphi 0, %s81
    %s85 = sphi 0, %s84
    %s101 = sphi 0, %s85
  $region4: #{a_call__.1} parent=0 // loop_header_branch
    %11 = sbr.rel (%p9) target = $region8
  $region5: #{a_call__.1} parent=0 // loop_body
    %s13 = ssub.s32 %s8, 1
    %s14 = ssub.s32 %s8, 2
    %s21 = sadd.s32 1, %s16
    %p22 = scmp.ge.s32.totalorder %s21, 1
    %s23 = scalar_select %p22, 0, %s21
    %s24 = sadd.s32 1, %s15
    %s25 = scalar_select %p22, %s24, %s15
    %p26 = scmp.ge.s32.totalorder %s25, 2
    %s27 = scalar_select %p26, 0, %s25
    %s28 = ssub.s32 %s15, %s27
    %s29 = ssub.s32 %s16, %s23
    %s30 = sor.u32 %s28, %s29
    %p31 = scmp.eq.s32.totalorder %s30, 0
    %s33 = sadd.s32 %s32, 1
    %s34 = scalar_select %p31, %s32, %s33
    %p37 = pneg %p31
    %p38 = scmp.eq.s32.totalorder %s8, 1
    %p39 = por %p37, %p38
    %p40 = scmp.ne.s32.totalorder %s32, %s35
    %p41 = scmp.eq.s32.totalorder %s8, 0
    %p42 = por %p40, %p41
    %p43 = scmp.ne.s32.totalorder %s32, %s35
    %p44 = scmp.eq.s32.totalorder %s13, 1
    %p45 = por %p43, %p44
    %p46 = scmp.ne.s32.totalorder %s35, %s36
    %p47 = scmp.eq.s32.totalorder %s13, 0
    %p48 = por %p46, %p47
    %p49 = scmp.ne.s32.totalorder %s35, %s36
    %p50 = scmp.eq.s32.totalorder %s14, 1
    %p51 = por %p49, %p50
    %p53 = scmp.ne.s32.totalorder %s36, %s52
    %p54 = scmp.eq.s32.totalorder %s14, 0
    %p55 = por %p53, %p54
    %s57 = sadd.s32 %s56, 1
    %p60 = scmp.eq.s32.totalorder %s8, 1
    %p61 = scmp.ne.s32.totalorder %s56, %s58
    %p62 = scmp.eq.s32.totalorder %s8, 0
    %p63 = por %p61, %p62
    %p64 = scmp.ne.s32.totalorder %s56, %s58
    %p65 = scmp.eq.s32.totalorder %s13, 1
    %p66 = por %p64, %p65
    %p67 = scmp.ne.s32.totalorder %s58, %s59
    %p68 = scmp.eq.s32.totalorder %s13, 0
    %p69 = por %p67, %p68
    %p70 = scmp.ne.s32.totalorder %s58, %s59
    %p71 = scmp.eq.s32.totalorder %s14, 1
    %p72 = por %p70, %p71
    %p74 = scmp.ne.s32.totalorder %s59, %s73
    %p75 = scmp.eq.s32.totalorder %s14, 0
    %p76 = por %p74, %p75
    %s77 = ssub.s32 %s15, %s27
    %s78 = ssub.s32 %s16, %s23
    %s79 = sor.u32 %s77, %s78
    %p80 = scmp.eq.s32.totalorder %s79, 0
    %s82 = sadd.s32 %s81, 1
    %s83 = scalar_select %p80, %s81, %s82
    %p86 = pneg %p80
    %p87 = scmp.eq.s32.totalorder %s8, 1
    %p88 = por %p86, %p87
    %p89 = scmp.ne.s32.totalorder %s81, %s84
    %p90 = scmp.eq.s32.totalorder %s8, 0
    %p91 = por %p89, %p90
    %p92 = scmp.ne.s32.totalorder %s81, %s84
    %p93 = scmp.eq.s32.totalorder %s13, 1
    %p94 = por %p92, %p93
    %p95 = scmp.ne.s32.totalorder %s84, %s85
    %p96 = scmp.eq.s32.totalorder %s13, 0
    %p97 = por %p95, %p96
    %p98 = scmp.ne.s32.totalorder %s84, %s85
    %p99 = scmp.eq.s32.totalorder %s14, 1
    %p100 = por %p98, %p99
    %p102 = scmp.ne.s32.totalorder %s85, %s101
    %p103 = scmp.eq.s32.totalorder %s14, 0
    %p104 = por %p102, %p103
    %p105 = scmp.le.s32.totalorder 1, %s8
    %p106 = scmp.lt.s32.totalorder %s8, 3
    %p107 = pnand %p105, %p106
    %p108 = pneg %p107
    // Predicated region
    $region9: #{a_call__.1} parent=5 // pred_check
      _
    $region10: #{a_call__.1} parent=5 // pred_check_branch
      %110 = sbr.rel (%p107) target = $region12
    $region11: #{a_call__.1} parent=5 // pred_region
      %s111 = ssub.s32 %s8, 1
      // Predicated region
      $region13: #{a_call__.1} parent=11 // pred_check
        %p112 = pneg %p69
      $region14: #{a_call__.1} parent=11 // pred_check_branch
        %114 = sbr.rel (%p112) target = $region16
      $region15: #{a_call__.1} parent=11 // pred_region
        _
      $region16: #{a_call__.1} parent=11 // pred_fallthru
        _
    $region12: #{a_call__.1} parent=5 // pred_fallthru
      _
    %p115 = scmp.lt.s32.totalorder %s8, 2
    // Predicated region
    $region17: #{a_call__.1} parent=5 // pred_check
      %p116 = pneg %p115
    $region18: #{a_call__.1} parent=5 // pred_check_branch
      %118 = sbr.rel (%p116) target = $region20
    $region19: #{a_call__.1} parent=5 // pred_region
      // Predicated region
      $region21: #{a_call__.1} parent=19 // pred_check
        %p119 = pneg %p42
      $region22: #{a_call__.1} parent=19 // pred_check_branch
        %121 = sbr.rel (%p119) target = $region24
      $region23: #{a_call__.1} parent=19 // pred_region
        %s122 = smul.u32 2, %s16
        %p123 = scmp.lt.s32.totalorder %s15, 1
        %s124 = scalar_select %p123, %s15, 1
        %p125 = scmp.lt.s32.totalorder %s122, 1
        %s126 = scalar_select %p125, %s122, 1
        %s127 = smul.addr %s124, 8
        %s128 = sadd.s32 %s126, %s127
        %s129 = smul.addr %s128, 8
        %s130 = scalar_lea.vmem %s0, %s129
        %s131 = smul.u32 2, %s16
      $region24: #{a_call__.1} parent=19 // pred_fallthru
        _
    $region20: #{a_call__.1} parent=5 // pred_fallthru
      _
    %p132 = scmp.le.s32.totalorder 1, %s8
    %p133 = scmp.lt.s32.totalorder %s8, 3
    %p134 = pnand %p132, %p133
    %p135 = pneg %p134
    // Predicated region
    $region25: #{a_call__.1} parent=5 // pred_check
      _
    $region26: #{a_call__.1} parent=5 // pred_check_branch
      %137 = sbr.rel (%p134) target = $region28
    $region27: #{a_call__.1} parent=5 // pred_region
      %s138 = ssub.s32 %s8, 1
      %s139 = smul.u32 2, %s18
      %p140 = scmp.lt.s32.totalorder %s17, 1
      %s141 = scalar_select %p140, %s17, 1
      %p142 = scmp.lt.s32.totalorder %s139, 1
      %s143 = scalar_select %p142, %s139, 1
      %s144 = smul.addr %s141, 8
      %s145 = sadd.s32 %s143, %s144
      %s146 = smul.addr %s145, 8
      %s147 = scalar_lea.vmem %s0, %s146
      %p148 = pneg %p48
      %p149 = pneg %p45
      %p150 = pneg %p69
      %p151 = pneg %p66
      %p152 = pneg %p97
      %p153 = pneg %p94
      %s154 = smul.u32 2, %s18
      %p155 = scmp.lt.s32.totalorder %s17, 1
      %s156 = scalar_select %p155, %s17, 1
      %p157 = scmp.lt.s32.totalorder %s154, 1
      %s158 = scalar_select %p157, %s154, 1
      %s159 = smul.addr %s156, 22
      %s160 = sadd.s32 %s158, %s159
      %s161 = smul.addr %s160, 4
      %s162 = scalar_lea.vmem %s2, %s161
      %s163 = smul.u32 2, %s18
      %p164 = scmp.lt.s32.totalorder %s17, 1
      %s165 = scalar_select %p164, %s17, 1
      %p166 = scmp.lt.s32.totalorder %s163, 1
      %s167 = scalar_select %p166, %s163, 1
      %s168 = smul.addr %s165, 8
      %s169 = sadd.s32 %s167, %s168
      %s170 = smul.addr %s169, 8
      %s171 = scalar_lea.vmem %s0, %s170
      %s172 = smul.u32 2, %s18
      %s173 = smul.u32 2, %s18
      %p174 = scmp.lt.s32.totalorder %s17, 1
      %s175 = scalar_select %p174, %s17, 1
      %p176 = scmp.lt.s32.totalorder %s173, 1
      %s177 = scalar_select %p176, %s173, 1
      %s178 = smul.addr %s175, 22
      %s179 = sadd.s32 %s177, %s178
      %s180 = smul.addr %s179, 4
      %s181 = scalar_lea.vmem %s2, %s180
      %s182 = smul.u32 2, %s18
      %v184 = vld [vmem:[%s171] sm:$0xff]
      %v185 = vld [vmem:[%s171 + $0x8] sm:$0xff]
      %v186 = vld [vmem:[%s171 + $0x10] sm:$0xff]
      %v187 = vld [vmem:[%s171 + $0x18] sm:$0xff]
      %v188 = vld [vmem:[%s171 + $0x20] sm:$0xff]
      %v189 = vld [vmem:[%s171 + $0x28] sm:$0xff]
      %v190 = vld [vmem:[%s171 + $0x30] sm:$0xff]
      %v191 = vld [vmem:[%s171 + $0x38] sm:$0xff]
      %v192 = vld [vmem:[%s1] sm:$0xff]
      %v193 = vld [vmem:[%s1 + $0x8] sm:$0xff]
      %v194 = vld [vmem:[%s1 + $0x10] sm:$0xff]
      %v195 = vld [vmem:[%s1 + $0x18] sm:$0xff]
      %v196 = vld [vmem:[%s1 + $0x20] sm:$0xff]
      %v197 = vld [vmem:[%s1 + $0x28] sm:$0xff]
      %v198 = vld [vmem:[%s1 + $0x30] sm:$0xff]
      %v199 = vld [vmem:[%s1 + $0x38] sm:$0xff]
      %v200 = vld [vmem:[%s1 + $0x40] sm:$0xff]
      %v201 = vld [vmem:[%s1 + $0x48] sm:$0xff]
      %v202 = vld [vmem:[%s1 + $0x50] sm:$0xf]
      %v203 = vpack.c.bf16 %v186, %v184
      %v204 = vpack.c.bf16 %v187, %v185
      %v205 = vpack.c.bf16 %v190, %v188
      %v206 = vpack.c.bf16 %v191, %v189
      %v207 = vpack.c.bf16 %v193, %v192
      %v208 = vpack.c.bf16 %v195, %v194
      %v209 = vpack.c.bf16 %v197, %v196
      %v210 = vpack.c.bf16 %v199, %v198
      %v211 = vpack.c.bf16 %v201, %v200
      %v212 = vpack.c.bf16 %v202, %v202
      %vm213 = vcmask 261120
      %v215 = vsel %vm213, %v207, 0
      %v218 = vsel %vm213, %v208, 0
      %v221 = vsel %vm213, %v209, 0
      %v224 = vsel %vm213, %v210, 0
      %v227 = vsel %vm213, %v211, 0
      %v230 = vsel %vm213, %v212, 0
      %232 = vmatprep.subr.bf16.mxu0 %v204
      %233 = vmatpush1.bf16.msra.mxu0 %v203
      %234 = vmatprep.subr.bf16.mxu0 %v206
      %235 = vmatpush1.bf16.msra.mxu0 %v205
      %236 = vmatprep.subr.bf16.mxu0 0
      %237 = vmatpush1.bf16.msra.mxu0 0
      %238 = vmatprep.subr.bf16.mxu0 0
      %239 = vmatpush1.bf16.msra.mxu0 0
      %240 = vmatprep.subr.bf16.mxu0 0
      %241 = vmatpush1.bf16.msra.mxu0 0
      %242 = vmatprep.subr.bf16.mxu0 0
      %243 = vmatpush1.bf16.msra.mxu0 0
      %244 = vmatprep.subr.bf16.mxu0 0
      %245 = vmatpush1.bf16.msra.mxu0 0
      %246 = vmatprep.subr.bf16.mxu0 0
      %247 = vmatpush1.bf16.msra.mxu0 0
      %248 = vmatprep.subr.bf16.mxu0 0
      %249 = vmatpush1.bf16.msra.mxu0 0
      %250 = vmatprep.subr.bf16.mxu0 0
      %251 = vmatpush1.bf16.msra.mxu0 0
      %252 = vmatprep.subr.bf16.mxu0 0
      %253 = vmatpush1.bf16.msra.mxu0 0
      %254 = vmatprep.subr.bf16.mxu0 0
      %255 = vmatpush1.bf16.msra.mxu0 0
      %256 = vmatprep.subr.bf16.mxu0 0
      %257 = vmatpush1.bf16.msra.mxu0 0
      %258 = vmatprep.subr.bf16.mxu0 0
      %259 = vmatpush1.bf16.msra.mxu0 0
      %260 = vmatprep.subr.bf16.mxu0 0
      %261 = vmatpush1.bf16.msra.mxu0 0
      %262 = vmatprep.subr.bf16.mxu0 0
      %263 = vmatpush1.bf16.msra.mxu0 0
      %264 = vmatprep.mubr.bf16.mxu0 0
      %265 = vmatmul.mubr.bf16.gmra.mrb[0].mxu0 %v215
      %v266 = vpop.f32.mrb[0].mxu0
      %v267 = vadd.f32 0.0, %v266
      %v268 = vpop.f32.mrb[0].mxu0
      %v269 = vadd.f32 0.0, %v268
      %v270 = vpop.f32.mrb[0].mxu0
      %v271 = vadd.f32 0.0, %v270
      %v272 = vpop.f32.mrb[0].mxu0
      %v273 = vadd.f32 0.0, %v272
      %274 = vmatprep.mubr.bf16.mxu0 0
      %275 = vmatmul.mubr.bf16.gmra.mrb[0].mxu0 %v218
      %v276 = vpop.f32.mrb[0].mxu0
      %v277 = vadd.f32 0.0, %v276
      %v278 = vpop.f32.mrb[0].mxu0
      %v279 = vadd.f32 0.0, %v278
      %v280 = vpop.f32.mrb[0].mxu0
      %v281 = vadd.f32 0.0, %v280
      %v282 = vpop.f32.mrb[0].mxu0
      %v283 = vadd.f32 0.0, %v282
      %284 = vmatprep.mubr.bf16.mxu0 0
      %285 = vmatmul.mubr.bf16.gmra.mrb[0].mxu0 %v221
      %v286 = vpop.f32.mrb[0].mxu0
      %v287 = vadd.f32 0.0, %v286
      %v288 = vpop.f32.mrb[0].mxu0
      %v289 = vadd.f32 0.0, %v288
      %v290 = vpop.f32.mrb[0].mxu0
      %v291 = vadd.f32 0.0, %v290
      %v292 = vpop.f32.mrb[0].mxu0
      %v293 = vadd.f32 0.0, %v292
      %294 = vmatprep.mubr.bf16.mxu0 0
      %295 = vmatmul.mubr.bf16.gmra.mrb[0].mxu0 %v224
      %v296 = vpop.f32.mrb[0].mxu0
      %v297 = vadd.f32 0.0, %v296
      %v298 = vpop.f32.mrb[0].mxu0
      %v299 = vadd.f32 0.0, %v298
      %v300 = vpop.f32.mrb[0].mxu0
      %v301 = vadd.f32 0.0, %v300
      %v302 = vpop.f32.mrb[0].mxu0
      %v303 = vadd.f32 0.0, %v302
      %304 = vmatprep.mubr.bf16.mxu0 0
      %305 = vmatmul.mubr.bf16.gmra.mrb[0].mxu0 %v227
      %v306 = vpop.f32.mrb[0].mxu0
      %v307 = vadd.f32 0.0, %v306
      %v308 = vpop.f32.mrb[0].mxu0
      %v309 = vadd.f32 0.0, %v308
      %v310 = vpop.f32.mrb[0].mxu0
      %v311 = vadd.f32 0.0, %v310
      %v312 = vpop.f32.mrb[0].mxu0
      %v313 = vadd.f32 0.0, %v312
      %314 = vmatprep.mubr.bf16.mxu0 0
      %315 = vmatmul.mubr.bf16.gmra.mrb[0].mxu0 %v230
      %v316 = vpop.f32.mrb[0].mxu0
      %v317 = vadd.f32 0.0, %v316
      %v318 = vpop.f32.mrb[0].mxu0
      %v319 = vadd.f32 0.0, %v318
      %v320 = vpop.f32.mrb[0].mxu0
      %v321 = vpop.f32.mrb[0].mxu0
      %322 = vdwg.mxu0
      %v323 = vpack.c.bf16 %v271, %v267
      %v324 = vpack.c.bf16 %v273, %v269
      %v325 = vpack.c.bf16 %v281, %v277
      %v326 = vpack.c.bf16 %v283, %v279
      %v327 = vpack.c.bf16 %v291, %v287
      %v328 = vpack.c.bf16 %v293, %v289
      %v329 = vpack.c.bf16 %v301, %v297
      %v330 = vpack.c.bf16 %v303, %v299
      %v331 = vpack.c.bf16 %v311, %v307
      %v332 = vpack.c.bf16 %v313, %v309
      %v333 = vpack.c.bf16 %v317, %v317
      %v334 = vpack.c.bf16 %v319, %v319
      %v347 = vunpack.c.l.b16 %v323
      %v348 = vunpack.c.l.b16 %v324
      %v349 = vunpack.c.h.b16 %v323
      %v350 = vunpack.c.h.b16 %v324
      %v351 = vunpack.c.l.b16 %v325
      %v352 = vunpack.c.l.b16 %v326
      %v353 = vunpack.c.h.b16 %v325
      %v354 = vunpack.c.h.b16 %v326
      %v355 = vunpack.c.l.b16 %v327
      %v356 = vunpack.c.l.b16 %v328
      %v357 = vunpack.c.h.b16 %v327
      %v358 = vunpack.c.h.b16 %v328
      %v359 = vunpack.c.l.b16 %v329
      %v360 = vunpack.c.l.b16 %v330
      %v361 = vunpack.c.h.b16 %v329
      %v362 = vunpack.c.h.b16 %v330
      %v363 = vunpack.c.l.b16 %v331
      %v364 = vunpack.c.l.b16 %v332
      %v365 = vunpack.c.h.b16 %v331
      %v366 = vunpack.c.h.b16 %v332
      %v367 = vunpack.c.l.b16 %v333
      %v368 = vunpack.c.l.b16 %v334
      %v369 = vpack.c.b16 %v348, %v347
      %v370 = vpack.c.b16 %v350, %v349
      %v371 = vpack.c.b16 %v352, %v351
      %v372 = vpack.c.b16 %v354, %v353
      %v373 = vpack.c.b16 %v356, %v355
      %v374 = vpack.c.b16 %v358, %v357
      %v375 = vpack.c.b16 %v360, %v359
      %v376 = vpack.c.b16 %v362, %v361
      %v377 = vpack.c.b16 %v364, %v363
      %v378 = vpack.c.b16 %v366, %v365
      %v379 = vpack.c.b16 %v368, %v367
      %391 = vst [vmem:[%s181] sm:$0xff] %v369
      %392 = vst [vmem:[%s181 + $0x8] sm:$0xff] %v370
      %393 = vst [vmem:[%s181 + $0x10] sm:$0xff] %v371
      %394 = vst [vmem:[%s181 + $0x18] sm:$0xff] %v372
      %395 = vst [vmem:[%s181 + $0x20] sm:$0xff] %v373
      %396 = vst [vmem:[%s181 + $0x28] sm:$0xff] %v374
      %397 = vst [vmem:[%s181 + $0x30] sm:$0xff] %v375
      %398 = vst [vmem:[%s181 + $0x38] sm:$0xff] %v376
      %399 = vst [vmem:[%s181 + $0x40] sm:$0xff] %v377
      %400 = vst [vmem:[%s181 + $0x48] sm:$0xff] %v378
      %401 = vst [vmem:[%s181 + $0x50] sm:$0x33] %v379
      %s402 = smul.u32 2, %s18
      %p403 = scmp.lt.s32.totalorder %s17, 1
      %s404 = scalar_select %p403, %s17, 1
      %p405 = scmp.lt.s32.totalorder %s402, 1
      %s406 = scalar_select %p405, %s402, 1
      %s407 = smul.addr %s404, 22
      %s408 = sadd.s32 %s406, %s407
      %s409 = smul.addr %s408, 4
      %s410 = scalar_lea.vmem %s2, %s409
      // Predicated region
      $region29: #{a_call__.1} parent=27 // pred_check
        %p411 = pneg %p94
      $region30: #{a_call__.1} parent=27 // pred_check_branch
        %413 = sbr.rel (%p411) target = $region32
      $region31: #{a_call__.1} parent=27 // pred_region
        %s414 = smul.u32 2, %s18
      $region32: #{a_call__.1} parent=27 // pred_fallthru
        _
    $region28: #{a_call__.1} parent=5 // pred_fallthru
      _
    %p415 = scmp.le.s32.totalorder 2, %s8
    // Predicated region
    $region33: #{a_call__.1} parent=5 // pred_check
      %p416 = pneg %p415
    $region34: #{a_call__.1} parent=5 // pred_check_branch
      %418 = sbr.rel (%p416) target = $region36
    $region35: #{a_call__.1} parent=5 // pred_region
      %s419 = ssub.s32 %s8, 2
      // Predicated region
      $region37: #{a_call__.1} parent=35 // pred_check
        %p420 = pneg %p100
      $region38: #{a_call__.1} parent=35 // pred_check_branch
        %422 = sbr.rel (%p420) target = $region40
      $region39: #{a_call__.1} parent=35 // pred_region
        %s423 = smul.u32 2, %s20
        %p424 = scmp.lt.s32.totalorder %s19, 1
        %s425 = scalar_select %p424, %s19, 1
        %p426 = scmp.lt.s32.totalorder %s423, 1
        %s427 = scalar_select %p426, %s423, 1
        %s428 = smul.addr %s425, 22
        %s429 = sadd.s32 %s427, %s428
        %s430 = smul.addr %s429, 4
        %s431 = scalar_lea.vmem %s2, %s430
      $region40: #{a_call__.1} parent=35 // pred_fallthru
        _
    $region36: #{a_call__.1} parent=5 // pred_fallthru
      _
  $region6: #{a_call__.1} parent=0 // loop_footer
    %s12 = sadd.s32 1, %s8
  $region7: #{a_call__.1} parent=0 // loop_footer_branch
    %7 = sbr.rel target = $region3
  $region8: #{a_call__.1} parent=0 // loop_exit
    _

</llo_original>
